<compile_context>
chip_gen: v7x
topology: tpu7x:2x2x1
jax: 0.10.0
libtpu: 0.0.40
codegen_flags: <defaults>
</compile_context>

<pallas_src>
import numpy as np
import jax
import jax.numpy as jnp
from jax.experimental import pallas as pl
from jax.experimental.pallas import tpu as pltpu


# ----------------------------------------------------------------------------
# Parameter init (synthetic weights, PyTorch nn.Linear-style uniform init).
# ----------------------------------------------------------------------------
def _init_mlp_params(key, dims, out_bias=True):
    """Returns (weights, biases, act_flags, prelu_alphas).

    Weights are stored transposed as (in, out).  The last layer has no
    activation and, when out_bias=False, no bias (matches the reference MLP).
    """
    weights, biases, acts, alphas = [], [], [], []
    n_layers = len(dims) - 1
    for li in range(n_layers):
        fan_in, fan_out = dims[li], dims[li + 1]
        key, kw, kb = jax.random.split(key, 3)
        bound = 1.0 / np.sqrt(fan_in)
        w = jax.random.uniform(kw, (fan_in, fan_out), jnp.float32, -bound, bound)
        last = li == n_layers - 1
        b = None if (last and not out_bias) else jax.random.uniform(
            kb, (1, fan_out), jnp.float32, -bound, bound)
        weights.append(w)
        biases.append(b)
        acts.append(not last)        # hidden PReLU only
        alphas.append(0.25)          # PyTorch PReLU default init slope
    return weights, biases, acts, alphas


# ----------------------------------------------------------------------------
# Kernel 1: fused wc_model + us_model over the shared flattened input.
# ----------------------------------------------------------------------------
def _make_build_kernel(n_layers, wc_acts, wc_alphas, us_acts, us_alphas):
    # refs = [x, (wc_w, wc_b)*n_layers, (us_w, us_b)*n_layers, wc_out, us_out]
    def chain(x, refs, start, acts, alphas):
        y, idx = x, start
        for li in range(n_layers):
            w = refs[idx][...]
            b = refs[idx + 1][...]
            idx += 2
            y = jnp.dot(y, w, preferred_element_type=jnp.float32) + b
            if acts[li]:
                y = jnp.where(y > 0, y, y * alphas[li])
        return y, idx

    def kernel(*refs):
        x = refs[0][...].astype(jnp.float32)
        wc_y, idx = chain(x, refs, 1, wc_acts, wc_alphas)
        us_y, idx = chain(x, refs, idx, us_acts, us_alphas)
        refs[idx][...] = wc_y
        refs[idx + 1][...] = us_y
    return kernel


# ----------------------------------------------------------------------------
# Kernel 2: fused candidate-topic scorer (bc_model -> masked sum -> lp_model).
# ----------------------------------------------------------------------------
def _make_score_kernel(B, T, C, Cbc, n_bc, bc_acts, bc_alphas,
                       n_lp, lp_acts, lp_alphas):
    """For every candidate topic k in [0, T):

        WC_k     = WC with row k incremented by wc[:, sample]
        BC_k     = base_sum - [k < n_topics]*bc(WC[:, k]) + bc(WC[:, k] + wc_row)
        out[:,k] = lp_model([BC_k, US])        (concat realized by split weights)

    Invalid candidates (k > n_topics) are masked to -inf outside the kernel.
    refs = [n_topics(SMEM), WC(B,T,C), wc_row(B,1,C), US(B,C),
            (bc_w, bc_b)*n_bc, lp params..., out(B,T)]
    """
    def kernel(*refs):
        nt = refs[0][0]                             # current topic count (int32)
        WC = refs[1][...]                           # (B, T, C)
        wrow = refs[2][...]                         # (B, 1, C)
        US = refs[3][...]                           # (B, C)
        idx = 4

        # bc_model over base rows and modified rows in one stacked matmul chain.
        x_base = WC.reshape(B * T, C)
        x_mod = (WC + wrow).reshape(B * T, C)
        y = jnp.concatenate([x_base, x_mod], axis=0)          # (2*B*T, C)
        for li in range(n_bc):
            w = refs[idx][...]
            b = refs[idx + 1][...]
            idx += 2
            y = jnp.dot(y, w, preferred_element_type=jnp.float32) + b
            if bc_acts[li]:
                y = jnp.where(y > 0, y, y * bc_alphas[li])
        yb = y[:B * T].reshape(B, T, Cbc)                     # bc(WC[:, t])
        ym = y[B * T:].reshape(B, T, Cbc)                     # bc(WC[:, t] + wc_row)

        # Valid-topic mask along T and incremental per-candidate BC sums.
        t_ids = jax.lax.broadcasted_iota(jnp.int32, (T, Cbc), 0)
        t_mask = (t_ids < nt).astype(jnp.float32)             # (T, Cbc)
        base = jnp.sum(yb * t_mask, axis=1)                   # (B, Cbc)
        BC = base[:, None, :] - t_mask * yb + ym              # (B, T, Cbc); T == candidates

        out_ref = refs[-1]
        if n_lp == 1:
            # Single linear layer, no bias, no activation (out_bias=False).
            w_us = refs[idx][...]                             # (C, 1)
            w_bc_row = refs[idx + 1][...]                     # (1, Cbc)
            us_term = jnp.dot(US, w_us, preferred_element_type=jnp.float32)  # (B, 1)
            bc_term = jnp.sum(BC * w_bc_row.reshape(1, 1, Cbc), axis=-1)     # (B, T)
            out_ref[...] = bc_term + us_term
            return

        # First lp layer with split weights (BC block + shared US block).
        w_us = refs[idx][...]                                 # (C, h1)
        w_bc = refs[idx + 1][...]                             # (Cbc, h1)
        b1 = refs[idx + 2][...]                               # (1, h1)
        idx += 3
        h1 = w_bc.shape[1]
        bc_part = jnp.dot(BC.reshape(B * T, Cbc), w_bc,
                          preferred_element_type=jnp.float32) + b1           # (B*T, h1)
        us_part = jnp.dot(US, w_us, preferred_element_type=jnp.float32)      # (B, h1)
        h = bc_part.reshape(B, T, h1) + us_part[:, None, :]
        if lp_acts[0]:
            h = jnp.where(h > 0, h, h * lp_alphas[0])

        if n_lp > 2:                                          # middle lp layers (2D)
            h2 = h.reshape(B * T, h1)
            for li in range(1, n_lp - 1):
                w = refs[idx][...]
                b = refs[idx + 1][...]
                idx += 2
                h2 = jnp.dot(h2, w, preferred_element_type=jnp.float32) + b
                if lp_acts[li]:
                    h2 = jnp.where(h2 > 0, h2, h2 * lp_alphas[li])
            h_prev = h2.shape[1]
            h3 = h2.reshape(B, T, h_prev)
        else:
            h3, h_prev = h, h1

        # Last lp layer: out_features=1, no bias, no activation -> lane reduce.
        w_last = refs[idx][...]                               # (1, h_prev)
        out_ref[...] = jnp.sum(h3 * w_last.reshape(1, 1, h_prev), axis=-1)   # (B, T)
    return kernel


# ----------------------------------------------------------------------------
# Encoder (NCP) — forward semantics follow the PyTorch reference.
# ----------------------------------------------------------------------------
class EncoderPallas:
    def __init__(self, in_channels, wc_channels=(24, 32), bc_channels=(48, 64),
                 lp_channels=(16, 1), seed=0):
        self.in_channels = in_channels
        self.wc_channels = (wc_channels,) if isinstance(wc_channels, int) else tuple(wc_channels)
        self.bc_channels = (bc_channels,) if isinstance(bc_channels, int) else tuple(bc_channels)
        self.lp_channels = (lp_channels,) if isinstance(lp_channels, int) else tuple(lp_channels)
        self.lp_channels += (1,) * (self.lp_channels[-1] != 1)

        C, Cbc = self.wc_channels[-1], self.bc_channels[-1]
        key = jax.random.PRNGKey(seed)
        k1, k2, k3, k4 = jax.random.split(key, 4)
        self.wc_w, self.wc_b, self.wc_acts, self.wc_alphas = _init_mlp_params(
            k1, (in_channels,) + self.wc_channels)
        self.us_w, self.us_b, self.us_acts, self.us_alphas = _init_mlp_params(
            k2, (in_channels,) + self.wc_channels)
        self.bc_w, self.bc_b, self.bc_acts, self.bc_alphas = _init_mlp_params(
            k3, (C,) + self.bc_channels)
        lp_w, lp_b, self.lp_acts, self.lp_alphas = _init_mlp_params(
            k4, (C + Cbc,) + self.lp_channels, out_bias=False)
        self.n_lp = len(lp_w)

        # Split the first lp layer into BC / US blocks (reference concatenates
        # (BC, US), so rows [:Cbc] act on BC and rows [Cbc:] on US); store the
        # final out_features=1 weight as a row so it becomes a lane reduce.
        w0 = lp_w[0]
        if self.n_lp == 1:
            self.lp_w_bc_row = jnp.transpose(w0[:Cbc, :])     # (1, Cbc)
            self.lp_w_us = w0[Cbc:, :]                        # (C, 1)
            self.lp_b1, self.lp_mid, self.lp_w_last_row = None, [], None
        else:
            self.lp_w_bc = w0[:Cbc, :]                        # (Cbc, h1)
            self.lp_w_us = w0[Cbc:, :]                        # (C, h1)
            self.lp_b1 = lp_b[0]                              # (1, h1)
            self.lp_mid = list(zip(lp_w[1:-1], lp_b[1:-1]))
            self.lp_w_last_row = jnp.transpose(lp_w[-1])      # (1, h_prev)

        self._fwd = jax.jit(self._forward_impl)

    # -- fused wc+us build kernel ---------------------------------------------
    def _run_build(self, flat):
        m = flat.shape[0]
        C = self.wc_channels[-1]
        n_layers = len(self.wc_w)
        inputs, specs = [flat], [pl.BlockSpec(flat.shape, lambda: (0, 0))]
        for w, b in list(zip(self.wc_w, self.wc_b)) + list(zip(self.us_w, self.us_b)):
            inputs += [w, b]
            specs += [pl.BlockSpec(w.shape, lambda: (0, 0)),
                      pl.BlockSpec(b.shape, lambda: (0, 0))]
        kernel = _make_build_kernel(n_layers, self.wc_acts, self.wc_alphas,
                                    self.us_acts, self.us_alphas)
        out_sds = jax.ShapeDtypeStruct((m, C), jnp.float32)
        out_spec = pl.BlockSpec((m, C), lambda: (0, 0))
        return pl.pallas_call(
            kernel,
            out_shape=(out_sds, out_sds),
            in_specs=specs,
            out_specs=(out_spec, out_spec),
        )(*inputs)

    # -- fused candidate scorer kernel -----------------------------------------
    def _run_score(self, WC, wrow, US, n_topics):
        B, T, C = WC.shape
        Cbc = self.bc_channels[-1]
        inputs = [jnp.reshape(n_topics, (1,)).astype(jnp.int32), WC, wrow, US]
        specs = [pl.BlockSpec(memory_space=pltpu.MemorySpace.SMEM),
                 pl.BlockSpec(WC.shape, lambda: (0, 0, 0)),
                 pl.BlockSpec(wrow.shape, lambda: (0, 0, 0)),
                 pl.BlockSpec(US.shape, lambda: (0, 0))]
        for w, b in zip(self.bc_w, self.bc_b):
            inputs += [w, b]
            specs += [pl.BlockSpec(w.shape, lambda: (0, 0)),
                      pl.BlockSpec(b.shape, lambda: (0, 0))]
        if self.n_lp == 1:
            lp_params = [self.lp_w_us, self.lp_w_bc_row]
        else:
            lp_params = [self.lp_w_us, self.lp_w_bc, self.lp_b1]
            for w, b in self.lp_mid:
                lp_params += [w, b]
            lp_params.append(self.lp_w_last_row)
        for p in lp_params:
            inputs.append(p)
            specs.append(pl.BlockSpec(p.shape, lambda: (0, 0)))
        kernel = _make_score_kernel(B, T, C, Cbc,
                                    len(self.bc_w), self.bc_acts, self.bc_alphas,
                                    self.n_lp, self.lp_acts, self.lp_alphas)
        return pl.pallas_call(
            kernel,
            out_shape=jax.ShapeDtypeStruct((B, T), jnp.float32),
            in_specs=specs,
            out_specs=pl.BlockSpec((B, T), lambda: (0, 0)),
        )(*inputs)

    # -- full generation loop, fully on device ---------------------------------
    def _forward_impl(self, data, key):
        B = data.shape[0] if data.ndim > 2 else 1
        N, F = data.shape[-2:]
        C = self.wc_channels[-1]
        Tmax = max(8, -(-N // 8) * 8)        # padded topic/candidate capacity

        flat = data.reshape(B * N, F).astype(jnp.float32)
        wc_flat, us_flat = self._run_build(flat)
        wc = wc_flat.reshape(B, N, C)
        us = us_flat.reshape(B, N, C)

        # US after update(i) == sum_{j > i} us[:, j] (precomputed suffix sums).
        rev = jnp.cumsum(us[:, ::-1], axis=1)[:, ::-1]                    # sum_{j >= i}
        US_steps = jnp.concatenate(
            [rev[:, 1:], jnp.zeros((B, 1, C), jnp.float32)], axis=1)      # (B, N, C)

        # Zero-padded WC: "append new cluster" == add into the first untouched
        # (all-zero) row, so update() is one uniform one-hot add.
        WC0 = jnp.zeros((B, Tmax, C), jnp.float32).at[:, 0].set(wc[:, 0])
        topics0 = jnp.zeros((N,), jnp.int32)
        t_range = jnp.arange(Tmax, dtype=jnp.int32)
        n_range = jnp.arange(N, dtype=jnp.int32)

        def body(i, carry):
            topics, WC, k = carry
            # update(i, topics): assign the previous sample to its topic.
            prev_t = topics[i - 1]
            onehot = (t_range == prev_t).astype(jnp.float32)              # (Tmax,)
            WC = WC + onehot[None, :, None] * wc[:, i - 1][:, None, :]
            n_topics = jnp.max(jnp.where(n_range < i, topics, 0)) + 1     # int32
            # sample(i): score all candidate topics with one fused kernel.
            lp = self._run_score(WC, wc[:, i][:, None, :], US_steps[:, i], n_topics)
            lp = jnp.where(t_range[None, :] <= n_topics, lp, -jnp.inf)    # mask pad
            m = jnp.max(lp, axis=1, keepdims=True)
            logp = lp - m - jnp.log(jnp.sum(jnp.exp(lp - m), axis=1, keepdims=True))
            k, sub = jax.random.split(k)
            samp = jax.random.categorical(sub, logp, axis=1)              # (B,)
            # torch.mode across the batch (ties -> smallest topic index).
            counts = jnp.sum(jax.nn.one_hot(samp, Tmax, dtype=jnp.int32), axis=0)
            topics = topics.at[i].set(jnp.argmax(counts).astype(jnp.int32))
            return topics, WC, k

        topics, _, _ = jax.lax.fori_loop(2, N, body, (topics0, WC0, key))
        return topics

    def forward(self, data, key):
        return self._fwd(data, key)

    __call__ = forward


# ----------------------------------------------------------------------------
if __name__ == "__main__":
    key = jax.random.PRNGKey(0)
    kdata, ksample = jax.random.split(key)
    B, N, F = 2, 8, 4                        # batch, samples, features
    data = jax.random.normal(kdata, (B, N, F), jnp.float32)

    enc = EncoderPallas(in_channels=F, wc_channels=(24, 32),
                        bc_channels=(48, 64), lp_channels=(16, 1), seed=0)
    topics = enc.forward(data, ksample)
    topics = jax.block_until_ready(topics)

    t = np.asarray(topics)
    assert topics.shape == (N,) and topics.dtype == jnp.int32
    assert t[0] == 0 and t[1] == 0
    for i in range(2, N):                    # greedy labels must stay contiguous
        assert 0 <= t[i] <= t[:i].max() + 1
    print("KERNEL_OK")
</pallas_src>

<mosaic_0001>
module attributes {stable_mosaic.version = 11 : i64} {
  func.func @kernel(%arg0: memref<16x4xf32, #tpu.memory_space<vmem>>, %arg1: memref<4x24xf32, #tpu.memory_space<vmem>>, %arg2: memref<1x24xf32, #tpu.memory_space<vmem>>, %arg3: memref<24x32xf32, #tpu.memory_space<vmem>>, %arg4: memref<1x32xf32, #tpu.memory_space<vmem>>, %arg5: memref<4x24xf32, #tpu.memory_space<vmem>>, %arg6: memref<1x24xf32, #tpu.memory_space<vmem>>, %arg7: memref<24x32xf32, #tpu.memory_space<vmem>>, %arg8: memref<1x32xf32, #tpu.memory_space<vmem>>, %arg9: memref<16x32xf32, #tpu.memory_space<vmem>>, %arg10: memref<16x32xf32, #tpu.memory_space<vmem>>) attributes {dimension_semantics = [], scalar_prefetch = 0 : i64, scratch_operands = 0 : i64, tpu.core_type = #tpu.core_type<tc>} {
    %c0 = arith.constant 0 : index
    %c0_0 = arith.constant 0 : index
    %0 = vector.load %arg0[%c0, %c0_0] : memref<16x4xf32, #tpu.memory_space<vmem>>, vector<16x4xf32>
    %c0_1 = arith.constant 0 : index
    %c0_2 = arith.constant 0 : index
    %1 = vector.load %arg1[%c0_1, %c0_2] : memref<4x24xf32, #tpu.memory_space<vmem>>, vector<4x24xf32>
    %c0_3 = arith.constant 0 : index
    %c0_4 = arith.constant 0 : index
    %2 = vector.load %arg2[%c0_3, %c0_4] : memref<1x24xf32, #tpu.memory_space<vmem>>, vector<1x24xf32>
    %cst = arith.constant dense<0.000000e+00> : vector<16x24xf32>
    %3 = tpu.matmul %0, %1, %cst {dimension_numbers = #tpu.dot_dimension_numbers<[1], [0], [0], [1], [0, 0, 1, 1], [], []>} : vector<16x4xf32>, vector<4x24xf32>, vector<16x24xf32> -> vector<16x24xf32>
    %4 = vector.broadcast %2 : vector<1x24xf32> to vector<16x24xf32>
    %5 = arith.addf %3, %4 : vector<16x24xf32>
    %cst_5 = arith.constant 0.000000e+00 : f32
    %6 = vector.broadcast %cst_5 : f32 to vector<16x24xf32>
    %7 = arith.cmpf ogt, %5, %6 : vector<16x24xf32>
    %cst_6 = arith.constant 2.500000e-01 : f32
    %8 = vector.broadcast %cst_6 : f32 to vector<16x24xf32>
    %9 = arith.mulf %5, %8 : vector<16x24xf32>
    %10 = arith.select %7, %5, %9 : vector<16x24xi1>, vector<16x24xf32>
    %c0_7 = arith.constant 0 : index
    %c0_8 = arith.constant 0 : index
    %11 = vector.load %arg3[%c0_7, %c0_8] : memref<24x32xf32, #tpu.memory_space<vmem>>, vector<24x32xf32>
    %c0_9 = arith.constant 0 : index
    %c0_10 = arith.constant 0 : index
    %12 = vector.load %arg4[%c0_9, %c0_10] : memref<1x32xf32, #tpu.memory_space<vmem>>, vector<1x32xf32>
    %cst_11 = arith.constant dense<0.000000e+00> : vector<16x32xf32>
    %13 = tpu.matmul %10, %11, %cst_11 {dimension_numbers = #tpu.dot_dimension_numbers<[1], [0], [0], [1], [0, 0, 1, 1], [], []>} : vector<16x24xf32>, vector<24x32xf32>, vector<16x32xf32> -> vector<16x32xf32>
    %14 = vector.broadcast %12 : vector<1x32xf32> to vector<16x32xf32>
    %15 = arith.addf %13, %14 : vector<16x32xf32>
    %c0_12 = arith.constant 0 : index
    %c0_13 = arith.constant 0 : index
    %16 = vector.load %arg5[%c0_12, %c0_13] : memref<4x24xf32, #tpu.memory_space<vmem>>, vector<4x24xf32>
    %c0_14 = arith.constant 0 : index
    %c0_15 = arith.constant 0 : index
    %17 = vector.load %arg6[%c0_14, %c0_15] : memref<1x24xf32, #tpu.memory_space<vmem>>, vector<1x24xf32>
    %cst_16 = arith.constant dense<0.000000e+00> : vector<16x24xf32>
    %18 = tpu.matmul %0, %16, %cst_16 {dimension_numbers = #tpu.dot_dimension_numbers<[1], [0], [0], [1], [0, 0, 1, 1], [], []>} : vector<16x4xf32>, vector<4x24xf32>, vector<16x24xf32> -> vector<16x24xf32>
    %19 = vector.broadcast %17 : vector<1x24xf32> to vector<16x24xf32>
    %20 = arith.addf %18, %19 : vector<16x24xf32>
    %cst_17 = arith.constant 0.000000e+00 : f32
    %21 = vector.broadcast %cst_17 : f32 to vector<16x24xf32>
    %22 = arith.cmpf ogt, %20, %21 : vector<16x24xf32>
    %cst_18 = arith.constant 2.500000e-01 : f32
    %23 = vector.broadcast %cst_18 : f32 to vector<16x24xf32>
    %24 = arith.mulf %20, %23 : vector<16x24xf32>
    %25 = arith.select %22, %20, %24 : vector<16x24xi1>, vector<16x24xf32>
    %c0_19 = arith.constant 0 : index
    %c0_20 = arith.constant 0 : index
    %26 = vector.load %arg7[%c0_19, %c0_20] : memref<24x32xf32, #tpu.memory_space<vmem>>, vector<24x32xf32>
    %c0_21 = arith.constant 0 : index
    %c0_22 = arith.constant 0 : index
    %27 = vector.load %arg8[%c0_21, %c0_22] : memref<1x32xf32, #tpu.memory_space<vmem>>, vector<1x32xf32>
    %cst_23 = arith.constant dense<0.000000e+00> : vector<16x32xf32>
    %28 = tpu.matmul %25, %26, %cst_23 {dimension_numbers = #tpu.dot_dimension_numbers<[1], [0], [0], [1], [0, 0, 1, 1], [], []>} : vector<16x24xf32>, vector<24x32xf32>, vector<16x32xf32> -> vector<16x32xf32>
    %29 = vector.broadcast %27 : vector<1x32xf32> to vector<16x32xf32>
    %30 = arith.addf %28, %29 : vector<16x32xf32>
    %c0_24 = arith.constant 0 : index
    %c0_25 = arith.constant 0 : index
    %31 = vector.load %arg9[%c0_24, %c0_25] : memref<16x32xf32, #tpu.memory_space<vmem>>, vector<16x32xf32>
    tpu.vector_store %arg9[%c0_24, %c0_25], %15 {strides = array<i32>} : memref<16x32xf32, #tpu.memory_space<vmem>>, vector<16x32xf32>,
    %c0_26 = arith.constant 0 : index
    %c0_27 = arith.constant 0 : index
    %32 = vector.load %arg10[%c0_26, %c0_27] : memref<16x32xf32, #tpu.memory_space<vmem>>, vector<16x32xf32>
    tpu.vector_store %arg10[%c0_26, %c0_27], %30 {strides = array<i32>} : memref<16x32xf32, #tpu.memory_space<vmem>>, vector<16x32xf32>,
    return
  }
}

module attributes {stable_mosaic.version = 11 : i64} {
  func.func @kernel(%arg0: memref<1xi32, #tpu.memory_space<smem>>, %arg1: memref<2x8x32xf32, #tpu.memory_space<vmem>>, %arg2: memref<2x1x32xf32, #tpu.memory_space<vmem>>, %arg3: memref<2x32xf32, #tpu.memory_space<vmem>>, %arg4: memref<32x48xf32, #tpu.memory_space<vmem>>, %arg5: memref<1x48xf32, #tpu.memory_space<vmem>>, %arg6: memref<48x64xf32, #tpu.memory_space<vmem>>, %arg7: memref<1x64xf32, #tpu.memory_space<vmem>>, %arg8: memref<32x16xf32, #tpu.memory_space<vmem>>, %arg9: memref<64x16xf32, #tpu.memory_space<vmem>>, %arg10: memref<1x16xf32, #tpu.memory_space<vmem>>, %arg11: memref<1x16xf32, #tpu.memory_space<vmem>>, %arg12: memref<2x8xf32, #tpu.memory_space<vmem>>) attributes {dimension_semantics = [], scalar_prefetch = 0 : i64, scratch_operands = 0 : i64, tpu.core_type = #tpu.core_type<tc>} {
    %c0 = arith.constant 0 : index
    %0 = memref.load %arg0[%c0] : memref<1xi32, #tpu.memory_space<smem>>
    %c0_0 = arith.constant 0 : index
    %c0_1 = arith.constant 0 : index
    %c0_2 = arith.constant 0 : index
    %1 = vector.load %arg1[%c0_0, %c0_1, %c0_2] : memref<2x8x32xf32, #tpu.memory_space<vmem>>, vector<2x8x32xf32>
    %c0_3 = arith.constant 0 : index
    %c0_4 = arith.constant 0 : index
    %c0_5 = arith.constant 0 : index
    %2 = vector.load %arg2[%c0_3, %c0_4, %c0_5] : memref<2x1x32xf32, #tpu.memory_space<vmem>>, vector<2x1x32xf32>
    %c0_6 = arith.constant 0 : index
    %c0_7 = arith.constant 0 : index
    %3 = vector.load %arg3[%c0_6, %c0_7] : memref<2x32xf32, #tpu.memory_space<vmem>>, vector<2x32xf32>
    %4 = vector.shape_cast %1 : vector<2x8x32xf32> to vector<16x32xf32>
    %5 = vector.broadcast %2 : vector<2x1x32xf32> to vector<2x8x32xf32>
    %6 = arith.addf %1, %5 : vector<2x8x32xf32>
    %7 = vector.shape_cast %6 : vector<2x8x32xf32> to vector<16x32xf32>
    %8 = tpu.concatenate %4, %7 in 0 : vector<16x32xf32>, vector<16x32xf32> -> vector<32x32xf32>
    %c0_8 = arith.constant 0 : index
    %c0_9 = arith.constant 0 : index
    %9 = vector.load %arg4[%c0_8, %c0_9] : memref<32x48xf32, #tpu.memory_space<vmem>>, vector<32x48xf32>
    %c0_10 = arith.constant 0 : index
    %c0_11 = arith.constant 0 : index
    %10 = vector.load %arg5[%c0_10, %c0_11] : memref<1x48xf32, #tpu.memory_space<vmem>>, vector<1x48xf32>
    %cst = arith.constant dense<0.000000e+00> : vector<32x48xf32>
    %11 = tpu.matmul %8, %9, %cst {dimension_numbers = #tpu.dot_dimension_numbers<[1], [0], [0], [1], [0, 0, 1, 1], [], []>} : vector<32x32xf32>, vector<32x48xf32>, vector<32x48xf32> -> vector<32x48xf32>
    %12 = vector.broadcast %10 : vector<1x48xf32> to vector<32x48xf32>
    %13 = arith.addf %11, %12 : vector<32x48xf32>
    %cst_12 = arith.constant 0.000000e+00 : f32
    %14 = vector.broadcast %cst_12 : f32 to vector<32x48xf32>
    %15 = arith.cmpf ogt, %13, %14 : vector<32x48xf32>
    %cst_13 = arith.constant 2.500000e-01 : f32
    %16 = vector.broadcast %cst_13 : f32 to vector<32x48xf32>
    %17 = arith.mulf %13, %16 : vector<32x48xf32>
    %18 = arith.select %15, %13, %17 : vector<32x48xi1>, vector<32x48xf32>
    %c0_14 = arith.constant 0 : index
    %c0_15 = arith.constant 0 : index
    %19 = vector.load %arg6[%c0_14, %c0_15] : memref<48x64xf32, #tpu.memory_space<vmem>>, vector<48x64xf32>
    %c0_16 = arith.constant 0 : index
    %c0_17 = arith.constant 0 : index
    %20 = vector.load %arg7[%c0_16, %c0_17] : memref<1x64xf32, #tpu.memory_space<vmem>>, vector<1x64xf32>
    %cst_18 = arith.constant dense<0.000000e+00> : vector<32x64xf32>
    %21 = tpu.matmul %18, %19, %cst_18 {dimension_numbers = #tpu.dot_dimension_numbers<[1], [0], [0], [1], [0, 0, 1, 1], [], []>} : vector<32x48xf32>, vector<48x64xf32>, vector<32x64xf32> -> vector<32x64xf32>
    %22 = vector.broadcast %20 : vector<1x64xf32> to vector<32x64xf32>
    %23 = arith.addf %21, %22 : vector<32x64xf32>
    %24 = vector.extract_strided_slice %23 {offsets = [0, 0], sizes = [16, 64], strides = [1, 1]} : vector<32x64xf32> to vector<16x64xf32>
    %25 = vector.shape_cast %24 : vector<16x64xf32> to vector<2x8x64xf32>
    %26 = vector.extract_strided_slice %23 {offsets = [16, 0], sizes = [16, 64], strides = [1, 1]} : vector<32x64xf32> to vector<16x64xf32>
    %27 = vector.shape_cast %26 : vector<16x64xf32> to vector<2x8x64xf32>
    %28 = tpu.iota {dimensions = array<i32: 0>} : vector<8x64xi32>
    %29 = vector.broadcast %0 : i32 to vector<8x64xi32>
    %30 = arith.cmpi slt, %28, %29 : vector<8x64xi32>
    %31 = arith.extui %30 : vector<8x64xi1> to vector<8x64xi32>
    %32 = arith.sitofp %31 : vector<8x64xi32> to vector<8x64xf32>
    %33 = vector.shape_cast %32 : vector<8x64xf32> to vector<1x8x64xf32>
    %34 = vector.broadcast %33 : vector<1x8x64xf32> to vector<2x8x64xf32>
    %35 = arith.mulf %25, %34 : vector<2x8x64xf32>
    %cst_19 = arith.constant dense<0.000000e+00> : vector<2x64xf32>
    %36 = vector.multi_reduction <add>, %35, %cst_19 [1] : vector<2x8x64xf32> to vector<2x64xf32>
    %37 = vector.shape_cast %36 : vector<2x64xf32> to vector<2x1x64xf32>
    %38 = vector.shape_cast %32 : vector<8x64xf32> to vector<1x8x64xf32>
    %39 = vector.broadcast %38 : vector<1x8x64xf32> to vector<2x8x64xf32>
    %40 = arith.mulf %39, %25 : vector<2x8x64xf32>
    %41 = vector.broadcast %37 : vector<2x1x64xf32> to vector<2x8x64xf32>
    %42 = arith.subf %41, %40 : vector<2x8x64xf32>
    %43 = arith.addf %42, %27 : vector<2x8x64xf32>
    %c0_20 = arith.constant 0 : index
    %c0_21 = arith.constant 0 : index
    %44 = vector.load %arg8[%c0_20, %c0_21] : memref<32x16xf32, #tpu.memory_space<vmem>>, vector<32x16xf32>
    %c0_22 = arith.constant 0 : index
    %c0_23 = arith.constant 0 : index
    %45 = vector.load %arg9[%c0_22, %c0_23] : memref<64x16xf32, #tpu.memory_space<vmem>>, vector<64x16xf32>
    %c0_24 = arith.constant 0 : index
    %c0_25 = arith.constant 0 : index
    %46 = vector.load %arg10[%c0_24, %c0_25] : memref<1x16xf32, #tpu.memory_space<vmem>>, vector<1x16xf32>
    %47 = vector.shape_cast %43 : vector<2x8x64xf32> to vector<16x64xf32>
    %cst_26 = arith.constant dense<0.000000e+00> : vector<16x16xf32>
    %48 = tpu.matmul %47, %45, %cst_26 {dimension_numbers = #tpu.dot_dimension_numbers<[1], [0], [0], [1], [0, 0, 1, 1], [], []>} : vector<16x64xf32>, vector<64x16xf32>, vector<16x16xf32> -> vector<16x16xf32>
    %49 = vector.broadcast %46 : vector<1x16xf32> to vector<16x16xf32>
    %50 = arith.addf %48, %49 : vector<16x16xf32>
    %cst_27 = arith.constant dense<0.000000e+00> : vector<2x16xf32>
    %51 = tpu.matmul %3, %44, %cst_27 {dimension_numbers = #tpu.dot_dimension_numbers<[1], [0], [0], [1], [0, 0, 1, 1], [], []>} : vector<2x32xf32>, vector<32x16xf32>, vector<2x16xf32> -> vector<2x16xf32>
    %52 = vector.shape_cast %50 : vector<16x16xf32> to vector<2x8x16xf32>
    %53 = vector.shape_cast %51 : vector<2x16xf32> to vector<2x1x16xf32>
    %54 = vector.broadcast %53 : vector<2x1x16xf32> to vector<2x8x16xf32>
    %55 = arith.addf %52, %54 : vector<2x8x16xf32>
    %cst_28 = arith.constant 0.000000e+00 : f32
    %56 = vector.broadcast %cst_28 : f32 to vector<2x8x16xf32>
    %57 = arith.cmpf ogt, %55, %56 : vector<2x8x16xf32>
    %cst_29 = arith.constant 2.500000e-01 : f32
    %58 = vector.broadcast %cst_29 : f32 to vector<2x8x16xf32>
    %59 = arith.mulf %55, %58 : vector<2x8x16xf32>
    %60 = arith.select %57, %55, %59 : vector<2x8x16xi1>, vector<2x8x16xf32>
    %c0_30 = arith.constant 0 : index
    %c0_31 = arith.constant 0 : index
    %61 = vector.load %arg11[%c0_30, %c0_31] : memref<1x16xf32, #tpu.memory_space<vmem>>, vector<1x16xf32>
    %62 = vector.shape_cast %61 : vector<1x16xf32> to vector<1x1x16xf32>
    %63 = vector.broadcast %62 : vector<1x1x16xf32> to vector<2x8x16xf32>
    %64 = arith.mulf %60, %63 : vector<2x8x16xf32>
    %cst_32 = arith.constant dense<0.000000e+00> : vector<2x8xf32>
    %65 = vector.multi_reduction <add>, %64, %cst_32 [2] : vector<2x8x16xf32> to vector<2x8xf32>
    %c0_33 = arith.constant 0 : index
    %c0_34 = arith.constant 0 : index
    %66 = vector.load %arg12[%c0_33, %c0_34] : memref<2x8xf32, #tpu.memory_space<vmem>>, vector<2x8xf32>
    tpu.vector_store %arg12[%c0_33, %c0_34], %65 {strides = array<i32>} : memref<2x8xf32, #tpu.memory_space<vmem>>, vector<2x8xf32>,
    return
  }
}

</mosaic_0001>

<llo_original>
// kernel: reverse
$region0: #{reverse}
  #allocation0 [shape = 's32[1]{0}', space=sflag, size = 0x4, scoped, tag = 'scoped memory for reverse']
  %s0 = inlined_call_operand.vmem [shape: f32[2,7,32], index: 0, kind: input, shape index: {}]
  %s1 = inlined_call_operand.vmem [shape: f32[2,7,32], index: 1, kind: output, shape index: {}]
  %s2 = scalar_lea.vmem %s0, 12
  %v3 = vld [vmem:[%s2] sm:$0x3]
  %4 = vst [vmem:[%s1] sm:$0x3] %v3
  %s5 = scalar_lea.vmem %s0, 10
  %v6 = vld [vmem:[%s5] sm:$0x3]
  %s7 = scalar_lea.vmem %s1, 2
  %8 = vst [vmem:[%s7] sm:$0x3] %v6
  %s9 = scalar_lea.vmem %s0, 8
  %v10 = vld [vmem:[%s9] sm:$0x3]
  %s11 = scalar_lea.vmem %s1, 4
  %12 = vst [vmem:[%s11] sm:$0x3] %v10
  %s13 = scalar_lea.vmem %s0, 6
  %v14 = vld [vmem:[%s13] sm:$0x3]
  %s15 = scalar_lea.vmem %s1, 6
  %16 = vst [vmem:[%s15] sm:$0x3] %v14
  %s17 = scalar_lea.vmem %s0, 4
  %v18 = vld [vmem:[%s17] sm:$0x3]
  %s19 = scalar_lea.vmem %s1, 8
  %20 = vst [vmem:[%s19] sm:$0x3] %v18
  %s21 = scalar_lea.vmem %s0, 2
  %v22 = vld [vmem:[%s21] sm:$0x3]
  %s23 = scalar_lea.vmem %s1, 10
  %24 = vst [vmem:[%s23] sm:$0x3] %v22
  %v25 = vld [vmem:[%s0] sm:$0x3]
  %s26 = scalar_lea.vmem %s1, 12
  %27 = vst [vmem:[%s26] sm:$0x3] %v25

// kernel: _forward_impl.1
$region0: #{_forward_impl.1}
  #allocation0 [shape = 'u32[]', space=smem, size = 0x4, offset = 0x4, fixed_abs, tag = 'smem constant byte address 0x4 - core index']
  #allocation1 [shape = 'u32[144,128]{1,0:T(1,128)}', space=vmem, size = 0x12000, scoped, tag = 'internal scratch']
  %s0 = inlined_call_operand.vmem [shape: f32[16,4], index: 0, kind: input, shape index: {}]
  %s1 = inlined_call_operand.vmem [shape: f32[4,24], index: 1, kind: input, shape index: {}]
  %s2 = inlined_call_operand.vmem [shape: f32[1,24], index: 2, kind: input, shape index: {}]
  %s3 = inlined_call_operand.vmem [shape: f32[24,32], index: 3, kind: input, shape index: {}]
  %s4 = inlined_call_operand.vmem [shape: f32[1,32], index: 4, kind: input, shape index: {}]
  %s5 = inlined_call_operand.vmem [shape: f32[4,24], index: 5, kind: input, shape index: {}]
  %s6 = inlined_call_operand.vmem [shape: f32[1,24], index: 6, kind: input, shape index: {}]
  %s7 = inlined_call_operand.vmem [shape: f32[24,32], index: 7, kind: input, shape index: {}]
  %s8 = inlined_call_operand.vmem [shape: f32[1,32], index: 8, kind: input, shape index: {}]
  %s9 = inlined_call_operand.vmem [shape: f32[16,32], index: 9, kind: output, shape index: {0}]
  %s10 = inlined_call_operand.vmem [shape: f32[16,32], index: 10, kind: output, shape index: {1}]
  %11 = xla_tuple %s9, %s10
  %s12 = sld [smem:[#allocation0]]
  $region54: #{_forward_impl.1} parent=0
    _
  %s14 = ssub.s32 1, %s12
  %s15 = scalar_select 0, %s14, %s12
  // Predicated region
  $region2: #{_forward_impl.1} parent=0 // pred_check
    _
  $region3: #{_forward_impl.1} parent=0 // pred_check_branch
    %17 = sbr.rel (0) target = $region5
  $region4: #{_forward_impl.1} parent=0 // pred_region
    _
  $region5: #{_forward_impl.1} parent=0 // pred_fallthru
    _
  // Predicated region
  $region6: #{_forward_impl.1} parent=0 // pred_check
    _
  $region7: #{_forward_impl.1} parent=0 // pred_check_branch
    %19 = sbr.rel (0) target = $region9
  $region8: #{_forward_impl.1} parent=0 // pred_region
    _
  $region9: #{_forward_impl.1} parent=0 // pred_fallthru
    _
  // Predicated region
  $region10: #{_forward_impl.1} parent=0 // pred_check
    _
  $region11: #{_forward_impl.1} parent=0 // pred_check_branch
    %21 = sbr.rel (0) target = $region13
  $region12: #{_forward_impl.1} parent=0 // pred_region
    _
  $region13: #{_forward_impl.1} parent=0 // pred_fallthru
    _
  // Predicated region
  $region14: #{_forward_impl.1} parent=0 // pred_check
    _
  $region15: #{_forward_impl.1} parent=0 // pred_check_branch
    %23 = sbr.rel (0) target = $region17
  $region16: #{_forward_impl.1} parent=0 // pred_region
    _
  $region17: #{_forward_impl.1} parent=0 // pred_fallthru
    _
  // Predicated region
  $region18: #{_forward_impl.1} parent=0 // pred_check
    _
  $region19: #{_forward_impl.1} parent=0 // pred_check_branch
    %25 = sbr.rel (0) target = $region21
  $region20: #{_forward_impl.1} parent=0 // pred_region
    _
  $region21: #{_forward_impl.1} parent=0 // pred_fallthru
    _
  // Predicated region
  $region22: #{_forward_impl.1} parent=0 // pred_check
    _
  $region23: #{_forward_impl.1} parent=0 // pred_check_branch
    %27 = sbr.rel (0) target = $region25
  $region24: #{_forward_impl.1} parent=0 // pred_region
    _
  $region25: #{_forward_impl.1} parent=0 // pred_fallthru
    _
  // Predicated region
  $region26: #{_forward_impl.1} parent=0 // pred_check
    _
  $region27: #{_forward_impl.1} parent=0 // pred_check_branch
    %29 = sbr.rel (0) target = $region29
  $region28: #{_forward_impl.1} parent=0 // pred_region
    _
  $region29: #{_forward_impl.1} parent=0 // pred_fallthru
    _
  // Predicated region
  $region30: #{_forward_impl.1} parent=0 // pred_check
    _
  $region31: #{_forward_impl.1} parent=0 // pred_check_branch
    %31 = sbr.rel (0) target = $region33
  $region32: #{_forward_impl.1} parent=0 // pred_region
    _
  $region33: #{_forward_impl.1} parent=0 // pred_fallthru
    _
  // Predicated region
  $region34: #{_forward_impl.1} parent=0 // pred_check
    _
  $region35: #{_forward_impl.1} parent=0 // pred_check_branch
    %33 = sbr.rel (0) target = $region37
  $region36: #{_forward_impl.1} parent=0 // pred_region
    _
  $region37: #{_forward_impl.1} parent=0 // pred_fallthru
    _
  %v34 = vld [vmem:[%s0] sm:$0xff]
  %v35 = vld [vmem:[%s0 + $0x8] sm:$0xff]
  %v36 = vld [vmem:[%s1] sm:$0xf]
  %v37 = vld [vmem:[%s2] sm:$0x1]
  %v39 = vlaneseq
  %v40 = vshrl.u32 %v39, 7
  %v41 = vsub.s32 0, %v40
  %v42 = vrot.slane %v37, %v41
  %vm44 = vcmask 31744
  %v46 = vsel %vm44, %v34, 0
  %v49 = vsel %vm44, %v35, 0
  %vm51 = vcmask 1043456
  %v53 = vsel %vm51, %v36, 0
  %55 = vmatprep.subr.mxu0 0.0
  %56 = vmatpush1.msra.mxu0 %v53
  %57 = vmatprep.subr.mxu0 0.0
  %58 = vmatpush1.msra.mxu0 0.0
  %59 = vmatprep.subr.mxu0 0.0
  %60 = vmatpush1.msra.mxu0 0.0
  %61 = vmatprep.subr.mxu0 0.0
  %62 = vmatpush1.msra.mxu0 0.0
  %63 = vmatprep.subr.mxu0 0.0
  %64 = vmatpush1.msra.mxu0 0.0
  %65 = vmatprep.subr.mxu0 0.0
  %66 = vmatpush1.msra.mxu0 0.0
  %67 = vmatprep.subr.mxu0 0.0
  %68 = vmatpush1.msra.mxu0 0.0
  %69 = vmatprep.subr.mxu0 0.0
  %70 = vmatpush1.msra.mxu0 0.0
  %71 = vmatprep.subr.mxu0 0.0
  %72 = vmatpush1.msra.mxu0 0.0
  %73 = vmatprep.subr.mxu0 0.0
  %74 = vmatpush1.msra.mxu0 0.0
  %75 = vmatprep.subr.mxu0 0.0
  %76 = vmatpush1.msra.mxu0 0.0
  %77 = vmatprep.subr.mxu0 0.0
  %78 = vmatpush1.msra.mxu0 0.0
  %79 = vmatprep.subr.mxu0 0.0
  %80 = vmatpush1.msra.mxu0 0.0
  %81 = vmatprep.subr.mxu0 0.0
  %82 = vmatpush1.msra.mxu0 0.0
  %83 = vmatprep.subr.mxu0 0.0
  %84 = vmatpush1.msra.mxu0 0.0
  %85 = vmatprep.subr.mxu0 0.0
  %86 = vmatpush1.msra.mxu0 0.0
  %87 = vmatprep.subr.mxu0 0.0
  %88 = vmatpush1.msra.mxu0 0.0
  %89 = vmatprep.subr.mxu0 0.0
  %90 = vmatpush1.msra.mxu0 0.0
  %91 = vmatprep.subr.mxu0 0.0
  %92 = vmatpush1.msra.mxu0 0.0
  %93 = vmatprep.subr.mxu0 0.0
  %94 = vmatpush1.msra.mxu0 0.0
  %95 = vmatprep.subr.mxu0 0.0
  %96 = vmatpush1.msra.mxu0 0.0
  %97 = vmatprep.subr.mxu0 0.0
  %98 = vmatpush1.msra.mxu0 0.0
  %99 = vmatprep.subr.mxu0 0.0
  %100 = vmatpush1.msra.mxu0 0.0
  %101 = vmatprep.subr.mxu0 0.0
  %102 = vmatpush1.msra.mxu0 0.0
  %103 = vmatprep.subr.mxu0 0.0
  %104 = vmatpush1.msra.mxu0 0.0
  %105 = vmatprep.subr.mxu0 0.0
  %106 = vmatpush1.msra.mxu0 0.0
  %107 = vmatprep.subr.mxu0 0.0
  %108 = vmatpush1.msra.mxu0 0.0
  %109 = vmatprep.subr.mxu0 0.0
  %110 = vmatpush1.msra.mxu0 0.0
  %111 = vmatprep.subr.mxu0 0.0
  %112 = vmatpush1.msra.mxu0 0.0
  %113 = vmatprep.subr.mxu0 0.0
  %114 = vmatpush1.msra.mxu0 0.0
  %115 = vmatprep.subr.mxu0 0.0
  %116 = vmatpush1.msra.mxu0 0.0
  %117 = vmatprep.subr.mxu0 0.0
  %118 = vmatpush1.msra.mxu0 0.0
  %119 = vmatprep.mubr.f32.mxu0 0.0
  %120 = vmatmul.mubr.f32.gmra.mrb[0].mxu0 %v46
  %v121 = vpop.f32.mrb[0].mxu0
  %v122 = vadd.f32 %v42, %v121
  %v123 = vpop.f32.mrb[0].mxu0
  %124 = vmatprep.mubr.f32.mxu0 0.0
  %125 = vmatmul.mubr.f32.gmra.mrb[0].mxu0 %v49
  %v126 = vpop.f32.mrb[0].mxu0
  %v127 = vadd.f32 %v42, %v126
  %v128 = vpop.f32.mrb[0].mxu0
  %129 = vdwg.mxu0
  %vm130 = vcmp.gt.f32.partialorder %v122, 0.0
  %vm131 = vcmp.gt.f32.partialorder %v127, 0.0
  %v132 = vmul.f32 %v122, 0.25
  %v133 = vmul.f32 %v127, 0.25
  %v134 = vsel %vm130, %v122, %v132
  %v135 = vsel %vm131, %v127, %v133
  %v136 = vld [vmem:[%s3] sm:$0xff]
  %v137 = vld [vmem:[%s3 + $0x8] sm:$0xff]
  %v138 = vld [vmem:[%s3 + $0x10] sm:$0xff]
  %v139 = vld [vmem:[%s4] sm:$0x1]
  %v141 = vlaneseq
  %v142 = vshrl.u32 %v141, 7
  %v143 = vsub.s32 0, %v142
  %v144 = vrot.slane %v139, %v143
  %vm146 = vcmask 195584
  %v148 = vsel %vm146, %v134, 0
  %v151 = vsel %vm146, %v135, 0
  %153 = vmatprep.subr.mxu0 0.0
  %154 = vmatpush1.msra.mxu0 %v136
  %155 = vmatprep.subr.mxu0 0.0
  %156 = vmatpush1.msra.mxu0 %v137
  %157 = vmatprep.subr.mxu0 0.0
  %158 = vmatpush1.msra.mxu0 %v138
  %159 = vmatprep.subr.mxu0 0.0
  %160 = vmatpush1.msra.mxu0 0.0
  %161 = vmatprep.subr.mxu0 0.0
  %162 = vmatpush1.msra.mxu0 0.0
  %163 = vmatprep.subr.mxu0 0.0
  %164 = vmatpush1.msra.mxu0 0.0
  %165 = vmatprep.subr.mxu0 0.0
  %166 = vmatpush1.msra.mxu0 0.0
  %167 = vmatprep.subr.mxu0 0.0
  %168 = vmatpush1.msra.mxu0 0.0
  %169 = vmatprep.subr.mxu0 0.0
  %170 = vmatpush1.msra.mxu0 0.0
  %171 = vmatprep.subr.mxu0 0.0
  %172 = vmatpush1.msra.mxu0 0.0
  %173 = vmatprep.subr.mxu0 0.0
  %174 = vmatpush1.msra.mxu0 0.0
  %175 = vmatprep.subr.mxu0 0.0
  %176 = vmatpush1.msra.mxu0 0.0
  %177 = vmatprep.subr.mxu0 0.0
  %178 = vmatpush1.msra.mxu0 0.0
  %179 = vmatprep.subr.mxu0 0.0
  %180 = vmatpush1.msra.mxu0 0.0
  %181 = vmatprep.subr.mxu0 0.0
  %182 = vmatpush1.msra.mxu0 0.0
  %183 = vmatprep.subr.mxu0 0.0
  %184 = vmatpush1.msra.mxu0 0.0
  %185 = vmatprep.subr.mxu0 0.0
  %186 = vmatpush1.msra.mxu0 0.0
  %187 = vmatprep.subr.mxu0 0.0
  %188 = vmatpush1.msra.mxu0 0.0
  %189 = vmatprep.subr.mxu0 0.0
  %190 = vmatpush1.msra.mxu0 0.0
  %191 = vmatprep.subr.mxu0 0.0
  %192 = vmatpush1.msra.mxu0 0.0
  %193 = vmatprep.subr.mxu0 0.0
  %194 = vmatpush1.msra.mxu0 0.0
  %195 = vmatprep.subr.mxu0 0.0
  %196 = vmatpush1.msra.mxu0 0.0
  %197 = vmatprep.subr.mxu0 0.0
  %198 = vmatpush1.msra.mxu0 0.0
  %199 = vmatprep.subr.mxu0 0.0
  %200 = vmatpush1.msra.mxu0 0.0
  %201 = vmatprep.subr.mxu0 0.0
  %202 = vmatpush1.msra.mxu0 0.0
  %203 = vmatprep.subr.mxu0 0.0
  %204 = vmatpush1.msra.mxu0 0.0
  %205 = vmatprep.subr.mxu0 0.0
  %206 = vmatpush1.msra.mxu0 0.0
  %207 = vmatprep.subr.mxu0 0.0
  %208 = vmatpush1.msra.mxu0 0.0
  %209 = vmatprep.subr.mxu0 0.0
  %210 = vmatpush1.msra.mxu0 0.0
  %211 = vmatprep.subr.mxu0 0.0
  %212 = vmatpush1.msra.mxu0 0.0
  %213 = vmatprep.subr.mxu0 0.0
  %214 = vmatpush1.msra.mxu0 0.0
  %215 = vmatprep.subr.mxu0 0.0
  %216 = vmatpush1.msra.mxu0 0.0
  %217 = vmatprep.mubr.f32.mxu0 0.0
  %218 = vmatmul.mubr.f32.gmra.mrb[0].mxu0 %v148
  %v219 = vpop.f32.mrb[0].mxu0
  %v220 = vadd.f32 %v144, %v219
  %v221 = vpop.f32.mrb[0].mxu0
  %222 = vmatprep.mubr.f32.mxu0 0.0
  %223 = vmatmul.mubr.f32.gmra.mrb[0].mxu0 %v151
  %v224 = vpop.f32.mrb[0].mxu0
  %v225 = vadd.f32 %v144, %v224
  %v226 = vpop.f32.mrb[0].mxu0
  %227 = vdwg.mxu0
  %v228 = vld [vmem:[%s5] sm:$0xf]
  %v229 = vld [vmem:[%s6] sm:$0x1]
  %v231 = vlaneseq
  %v232 = vshrl.u32 %v231, 7
  %v233 = vsub.s32 0, %v232
  %v234 = vrot.slane %v229, %v233
  %v237 = vsel %vm51, %v228, 0
  %239 = vmatprep.subr.mxu0 0.0
  %240 = vmatpush1.msra.mxu0 %v237
  %241 = vmatprep.subr.mxu0 0.0
  %242 = vmatpush1.msra.mxu0 0.0
  %243 = vmatprep.subr.mxu0 0.0
  %244 = vmatpush1.msra.mxu0 0.0
  %245 = vmatprep.subr.mxu0 0.0
  %246 = vmatpush1.msra.mxu0 0.0
  %247 = vmatprep.subr.mxu0 0.0
  %248 = vmatpush1.msra.mxu0 0.0
  %249 = vmatprep.subr.mxu0 0.0
  %250 = vmatpush1.msra.mxu0 0.0
  %251 = vmatprep.subr.mxu0 0.0
  %252 = vmatpush1.msra.mxu0 0.0
  %253 = vmatprep.subr.mxu0 0.0
  %254 = vmatpush1.msra.mxu0 0.0
  %255 = vmatprep.subr.mxu0 0.0
  %256 = vmatpush1.msra.mxu0 0.0
  %257 = vmatprep.subr.mxu0 0.0
  %258 = vmatpush1.msra.mxu0 0.0
  %259 = vmatprep.subr.mxu0 0.0
  %260 = vmatpush1.msra.mxu0 0.0
  %261 = vmatprep.subr.mxu0 0.0
  %262 = vmatpush1.msra.mxu0 0.0
  %263 = vmatprep.subr.mxu0 0.0
  %264 = vmatpush1.msra.mxu0 0.0
  %265 = vmatprep.subr.mxu0 0.0
  %266 = vmatpush1.msra.mxu0 0.0
  %267 = vmatprep.subr.mxu0 0.0
  %268 = vmatpush1.msra.mxu0 0.0
  %269 = vmatprep.subr.mxu0 0.0
  %270 = vmatpush1.msra.mxu0 0.0
  %271 = vmatprep.subr.mxu0 0.0
  %272 = vmatpush1.msra.mxu0 0.0
  %273 = vmatprep.subr.mxu0 0.0
  %274 = vmatpush1.msra.mxu0 0.0
  %275 = vmatprep.subr.mxu0 0.0
  %276 = vmatpush1.msra.mxu0 0.0
  %277 = vmatprep.subr.mxu0 0.0
  %278 = vmatpush1.msra.mxu0 0.0
  %279 = vmatprep.subr.mxu0 0.0
  %280 = vmatpush1.msra.mxu0 0.0
  %281 = vmatprep.subr.mxu0 0.0
  %282 = vmatpush1.msra.mxu0 0.0
  %283 = vmatprep.subr.mxu0 0.0
  %284 = vmatpush1.msra.mxu0 0.0
  %285 = vmatprep.subr.mxu0 0.0
  %286 = vmatpush1.msra.mxu0 0.0
  %287 = vmatprep.subr.mxu0 0.0
  %288 = vmatpush1.msra.mxu0 0.0
  %289 = vmatprep.subr.mxu0 0.0
  %290 = vmatpush1.msra.mxu0 0.0
  %291 = vmatprep.subr.mxu0 0.0
  %292 = vmatpush1.msra.mxu0 0.0
  %293 = vmatprep.subr.mxu0 0.0
  %294 = vmatpush1.msra.mxu0 0.0
  %295 = vmatprep.subr.mxu0 0.0
  %296 = vmatpush1.msra.mxu0 0.0
  %297 = vmatprep.subr.mxu0 0.0
  %298 = vmatpush1.msra.mxu0 0.0
  %299 = vmatprep.subr.mxu0 0.0
  %300 = vmatpush1.msra.mxu0 0.0
  %301 = vmatprep.subr.mxu0 0.0
  %302 = vmatpush1.msra.mxu0 0.0
  %303 = vmatprep.mubr.f32.mxu0 0.0
  %304 = vmatmul.mubr.f32.gmra.mrb[0].mxu0 %v46
  %v305 = vpop.f32.mrb[0].mxu0
  %v306 = vadd.f32 %v234, %v305
  %v307 = vpop.f32.mrb[0].mxu0
  %308 = vmatprep.mubr.f32.mxu0 0.0
  %309 = vmatmul.mubr.f32.gmra.mrb[0].mxu0 %v49
  %v310 = vpop.f32.mrb[0].mxu0
  %v311 = vadd.f32 %v234, %v310
  %v312 = vpop.f32.mrb[0].mxu0
  %313 = vdwg.mxu0
  %vm314 = vcmp.gt.f32.partialorder %v306, 0.0
  %vm315 = vcmp.gt.f32.partialorder %v311, 0.0
  %v316 = vmul.f32 %v306, 0.25
  %v317 = vmul.f32 %v311, 0.25
  %v318 = vsel %vm314, %v306, %v316
  %v319 = vsel %vm315, %v311, %v317
  %v320 = vld [vmem:[%s7] sm:$0xff]
  %v321 = vld [vmem:[%s7 + $0x8] sm:$0xff]
  %v322 = vld [vmem:[%s7 + $0x10] sm:$0xff]
  %v323 = vld [vmem:[%s8] sm:$0x1]
  %v325 = vlaneseq
  %v326 = vshrl.u32 %v325, 7
  %v327 = vsub.s32 0, %v326
  %v328 = vrot.slane %v323, %v327
  %v331 = vsel %vm146, %v318, 0
  %v334 = vsel %vm146, %v319, 0
  %336 = vmatprep.subr.mxu0 0.0
  %337 = vmatpush1.msra.mxu0 %v320
  %338 = vmatprep.subr.mxu0 0.0
  %339 = vmatpush1.msra.mxu0 %v321
  %340 = vmatprep.subr.mxu0 0.0
  %341 = vmatpush1.msra.mxu0 %v322
  %342 = vmatprep.subr.mxu0 0.0
  %343 = vmatpush1.msra.mxu0 0.0
  %344 = vmatprep.subr.mxu0 0.0
  %345 = vmatpush1.msra.mxu0 0.0
  %346 = vmatprep.subr.mxu0 0.0
  %347 = vmatpush1.msra.mxu0 0.0
  %348 = vmatprep.subr.mxu0 0.0
  %349 = vmatpush1.msra.mxu0 0.0
  %350 = vmatprep.subr.mxu0 0.0
  %351 = vmatpush1.msra.mxu0 0.0
  %352 = vmatprep.subr.mxu0 0.0
  %353 = vmatpush1.msra.mxu0 0.0
  %354 = vmatprep.subr.mxu0 0.0
  %355 = vmatpush1.msra.mxu0 0.0
  %356 = vmatprep.subr.mxu0 0.0
  %357 = vmatpush1.msra.mxu0 0.0
  %358 = vmatprep.subr.mxu0 0.0
  %359 = vmatpush1.msra.mxu0 0.0
  %360 = vmatprep.subr.mxu0 0.0
  %361 = vmatpush1.msra.mxu0 0.0
  %362 = vmatprep.subr.mxu0 0.0
  %363 = vmatpush1.msra.mxu0 0.0
  %364 = vmatprep.subr.mxu0 0.0
  %365 = vmatpush1.msra.mxu0 0.0
  %366 = vmatprep.subr.mxu0 0.0
  %367 = vmatpush1.msra.mxu0 0.0
  %368 = vmatprep.subr.mxu0 0.0
  %369 = vmatpush1.msra.mxu0 0.0
  %370 = vmatprep.subr.mxu0 0.0
  %371 = vmatpush1.msra.mxu0 0.0
  %372 = vmatprep.subr.mxu0 0.0
  %373 = vmatpush1.msra.mxu0 0.0
  %374 = vmatprep.subr.mxu0 0.0
  %375 = vmatpush1.msra.mxu0 0.0
  %376 = vmatprep.subr.mxu0 0.0
  %377 = vmatpush1.msra.mxu0 0.0
  %378 = vmatprep.subr.mxu0 0.0
  %379 = vmatpush1.msra.mxu0 0.0
  %380 = vmatprep.subr.mxu0 0.0
  %381 = vmatpush1.msra.mxu0 0.0
  %382 = vmatprep.subr.mxu0 0.0
  %383 = vmatpush1.msra.mxu0 0.0
  %384 = vmatprep.subr.mxu0 0.0
  %385 = vmatpush1.msra.mxu0 0.0
  %386 = vmatprep.subr.mxu0 0.0
  %387 = vmatpush1.msra.mxu0 0.0
  %388 = vmatprep.subr.mxu0 0.0
  %389 = vmatpush1.msra.mxu0 0.0
  %390 = vmatprep.subr.mxu0 0.0
  %391 = vmatpush1.msra.mxu0 0.0
  %392 = vmatprep.subr.mxu0 0.0
  %393 = vmatpush1.msra.mxu0 0.0
  %394 = vmatprep.subr.mxu0 0.0
  %395 = vmatpush1.msra.mxu0 0.0
  %396 = vmatprep.subr.mxu0 0.0
  %397 = vmatpush1.msra.mxu0 0.0
  %398 = vmatprep.subr.mxu0 0.0
  %399 = vmatpush1.msra.mxu0 0.0
  %400 = vmatprep.mubr.f32.mxu0 0.0
  %401 = vmatmul.mubr.f32.gmra.mrb[0].mxu0 %v331
  %v402 = vpop.f32.mrb[0].mxu0
  %v403 = vadd.f32 %v328, %v402
  %v404 = vpop.f32.mrb[0].mxu0
  %405 = vmatprep.mubr.f32.mxu0 0.0
  %406 = vmatmul.mubr.f32.gmra.mrb[0].mxu0 %v334
  %v407 = vpop.f32.mrb[0].mxu0
  %v408 = vadd.f32 %v328, %v407
  %v409 = vpop.f32.mrb[0].mxu0
  %410 = vdwg.mxu0
  %vm411 = vcmask 261120
  %412 = vst.msk [vmem:[%s9] sm:$0xff] %vm411, %v220
  %413 = vst.msk [vmem:[%s9 + $0x8] sm:$0xff] %vm411, %v225
  %414 = vst.msk [vmem:[%s10] sm:$0xff] %vm411, %v403
  %415 = vst.msk [vmem:[%s10 + $0x8] sm:$0xff] %vm411, %v408
  // Predicated region
  $region38: #{_forward_impl.1} parent=0 // pred_check
    _
  $region39: #{_forward_impl.1} parent=0 // pred_check_branch
    %417 = sbr.rel (0) target = $region41
  $region40: #{_forward_impl.1} parent=0 // pred_region
    _
  $region41: #{_forward_impl.1} parent=0 // pred_fallthru
    _
  // Predicated region
  $region42: #{_forward_impl.1} parent=0 // pred_check
    _
  $region43: #{_forward_impl.1} parent=0 // pred_check_branch
    %419 = sbr.rel (0) target = $region45
  $region44: #{_forward_impl.1} parent=0 // pred_region
    _
  $region45: #{_forward_impl.1} parent=0 // pred_fallthru
    _
  // Predicated region
  $region46: #{_forward_impl.1} parent=0 // pred_check
    _
  $region47: #{_forward_impl.1} parent=0 // pred_check_branch
    %421 = sbr.rel (0) target = $region49
  $region48: #{_forward_impl.1} parent=0 // pred_region
    _
  $region49: #{_forward_impl.1} parent=0 // pred_fallthru
    _
  // Predicated region
  $region50: #{_forward_impl.1} parent=0 // pred_check
    _
  $region51: #{_forward_impl.1} parent=0 // pred_check_branch
    %423 = sbr.rel (0) target = $region53
  $region52: #{_forward_impl.1} parent=0 // pred_region
    _
  $region53: #{_forward_impl.1} parent=0 // pred_fallthru
    _

// kernel: closed_call.23
$region0: #{closed_call.23}
  #allocation0 [shape = 'u32[]', space=smem, size = 0x4, offset = 0x4, fixed_abs, tag = 'smem constant byte address 0x4 - core index']
  #allocation1 [shape = 'u32[144,128]{1,0:T(1,128)}', space=vmem, size = 0x12000, scoped, tag = 'internal scratch']
  #allocation2 [shape = 's32[1]{0:T(128)S(6)}', space=smem, size = 0x200, scoped, tag = 'scoped memory for closed_call.23']
  %s0 = inlined_call_operand.<no memory space> [shape: s32[1], index: 0, kind: input, shape index: {}]
  %s1 = inlined_call_operand.vmem [shape: f32[2,8,32], index: 1, kind: input, shape index: {}]
  %s2 = inlined_call_operand.vmem [shape: f32[2,1,32], index: 2, kind: input, shape index: {}]
  %s3 = inlined_call_operand.vmem [shape: f32[2,32], index: 3, kind: input, shape index: {}]
  %s4 = inlined_call_operand.vmem [shape: f32[32,48], index: 4, kind: input, shape index: {}]
  %s5 = inlined_call_operand.vmem [shape: f32[1,48], index: 5, kind: input, shape index: {}]
  %s6 = inlined_call_operand.vmem [shape: f32[48,64], index: 6, kind: input, shape index: {}]
  %s7 = inlined_call_operand.vmem [shape: f32[1,64], index: 7, kind: input, shape index: {}]
  %s8 = inlined_call_operand.vmem [shape: f32[32,16], index: 8, kind: input, shape index: {}]
  %s9 = inlined_call_operand.vmem [shape: f32[64,16], index: 9, kind: input, shape index: {}]
  %s10 = inlined_call_operand.vmem [shape: f32[1,16], index: 10, kind: input, shape index: {}]
  %s11 = inlined_call_operand.vmem [shape: f32[1,16], index: 11, kind: input, shape index: {}]
  %s12 = inlined_call_operand.vmem [shape: f32[2,8], index: 12, kind: output, shape index: {}]
  %s13 = sld [smem:[#allocation0]]
  $region58: #{closed_call.23} parent=0
    _
  %s15 = ssub.s32 1, %s13
  %s16 = scalar_select 0, %s15, %s13
  %17 = sst [smem:[#allocation2]] %s0
  // Predicated region
  $region2: #{closed_call.23} parent=0 // pred_check
    _
  $region3: #{closed_call.23} parent=0 // pred_check_branch
    %19 = sbr.rel (0) target = $region5
  $region4: #{closed_call.23} parent=0 // pred_region
    _
  $region5: #{closed_call.23} parent=0 // pred_fallthru
    _
  // Predicated region
  $region6: #{closed_call.23} parent=0 // pred_check
    _
  $region7: #{closed_call.23} parent=0 // pred_check_branch
    %21 = sbr.rel (0) target = $region9
  $region8: #{closed_call.23} parent=0 // pred_region
    _
  $region9: #{closed_call.23} parent=0 // pred_fallthru
    _
  // Predicated region
  $region10: #{closed_call.23} parent=0 // pred_check
    _
  $region11: #{closed_call.23} parent=0 // pred_check_branch
    %23 = sbr.rel (0) target = $region13
  $region12: #{closed_call.23} parent=0 // pred_region
    _
  $region13: #{closed_call.23} parent=0 // pred_fallthru
    _
  // Predicated region
  $region14: #{closed_call.23} parent=0 // pred_check
    _
  $region15: #{closed_call.23} parent=0 // pred_check_branch
    %25 = sbr.rel (0) target = $region17
  $region16: #{closed_call.23} parent=0 // pred_region
    _
  $region17: #{closed_call.23} parent=0 // pred_fallthru
    _
  // Predicated region
  $region18: #{closed_call.23} parent=0 // pred_check
    _
  $region19: #{closed_call.23} parent=0 // pred_check_branch
    %27 = sbr.rel (0) target = $region21
  $region20: #{closed_call.23} parent=0 // pred_region
    _
  $region21: #{closed_call.23} parent=0 // pred_fallthru
    _
  // Predicated region
  $region22: #{closed_call.23} parent=0 // pred_check
    _
  $region23: #{closed_call.23} parent=0 // pred_check_branch
    %29 = sbr.rel (0) target = $region25
  $region24: #{closed_call.23} parent=0 // pred_region
    _
  $region25: #{closed_call.23} parent=0 // pred_fallthru
    _
  // Predicated region
  $region26: #{closed_call.23} parent=0 // pred_check
    _
  $region27: #{closed_call.23} parent=0 // pred_check_branch
    %31 = sbr.rel (0) target = $region29
  $region28: #{closed_call.23} parent=0 // pred_region
    _
  $region29: #{closed_call.23} parent=0 // pred_fallthru
    _
  // Predicated region
  $region30: #{closed_call.23} parent=0 // pred_check
    _
  $region31: #{closed_call.23} parent=0 // pred_check_branch
    %33 = sbr.rel (0) target = $region33
  $region32: #{closed_call.23} parent=0 // pred_region
    _
  $region33: #{closed_call.23} parent=0 // pred_fallthru
    _
  // Predicated region
  $region34: #{closed_call.23} parent=0 // pred_check
    _
  $region35: #{closed_call.23} parent=0 // pred_check_branch
    %35 = sbr.rel (0) target = $region37
  $region36: #{closed_call.23} parent=0 // pred_region
    _
  $region37: #{closed_call.23} parent=0 // pred_fallthru
    _
  // Predicated region
  $region38: #{closed_call.23} parent=0 // pred_check
    _
  $region39: #{closed_call.23} parent=0 // pred_check_branch
    %37 = sbr.rel (0) target = $region41
  $region40: #{closed_call.23} parent=0 // pred_region
    _
  $region41: #{closed_call.23} parent=0 // pred_fallthru
    _
  // Predicated region
  $region42: #{closed_call.23} parent=0 // pred_check
    _
  $region43: #{closed_call.23} parent=0 // pred_check_branch
    %39 = sbr.rel (0) target = $region45
  $region44: #{closed_call.23} parent=0 // pred_region
    _
  $region45: #{closed_call.23} parent=0 // pred_fallthru
    _
  // Predicated region
  $region46: #{closed_call.23} parent=0 // pred_check
    _
  $region47: #{closed_call.23} parent=0 // pred_check_branch
    %41 = sbr.rel (0) target = $region49
  $region48: #{closed_call.23} parent=0 // pred_region
    _
  $region49: #{closed_call.23} parent=0 // pred_fallthru
    _
  %s42 = sld [smem:[#allocation2]]
  %v43 = vld [vmem:[%s1] sm:$0xff]
  %v44 = vld [vmem:[%s1 + $0x8] sm:$0xff]
  %v45 = vld [vmem:[%s2] sm:$0x1]
  %v46 = vld [vmem:[%s2 + $0x1] sm:$0x1]
  %v47 = vld [vmem:[%s3] sm:$0x3]
  %v50 = vlaneseq
  %v51 = vshrl.u32 %v50, 7
  %v52 = vsub.s32 0, %v51
  %v53 = vrot.slane %v45, %v52
  %v54 = vlaneseq
  %v55 = vshrl.u32 %v54, 7
  %v56 = vsub.s32 0, %v55
  %v57 = vrot.slane %v46, %v56
  %v60 = vadd.f32 %v43, %v53
  %v61 = vadd.f32 %v44, %v57
  %v62 = vld [vmem:[%s4] sm:$0xff]
  %v63 = vld [vmem:[%s4 + $0x8] sm:$0xff]
  %v64 = vld [vmem:[%s4 + $0x10] sm:$0xff]
  %v65 = vld [vmem:[%s4 + $0x18] sm:$0xff]
  %v66 = vld [vmem:[%s5] sm:$0x1]
  %v68 = vlaneseq
  %v69 = vshrl.u32 %v68, 7
  %v70 = vsub.s32 0, %v69
  %v71 = vrot.slane %v66, %v70
  %vm73 = vcmask 261120
  %v75 = vsel %vm73, %v43, 0
  %v78 = vsel %vm73, %v44, 0
  %v81 = vsel %vm73, %v60, 0
  %v84 = vsel %vm73, %v61, 0
  %86 = vmatprep.subr.mxu0 0.0
  %87 = vmatpush1.msra.mxu0 %v62
  %88 = vmatprep.subr.mxu0 0.0
  %89 = vmatpush1.msra.mxu0 %v63
  %90 = vmatprep.subr.mxu0 0.0
  %91 = vmatpush1.msra.mxu0 %v64
  %92 = vmatprep.subr.mxu0 0.0
  %93 = vmatpush1.msra.mxu0 %v65
  %94 = vmatprep.subr.mxu0 0.0
  %95 = vmatpush1.msra.mxu0 0.0
  %96 = vmatprep.subr.mxu0 0.0
  %97 = vmatpush1.msra.mxu0 0.0
  %98 = vmatprep.subr.mxu0 0.0
  %99 = vmatpush1.msra.mxu0 0.0
  %100 = vmatprep.subr.mxu0 0.0
  %101 = vmatpush1.msra.mxu0 0.0
  %102 = vmatprep.subr.mxu0 0.0
  %103 = vmatpush1.msra.mxu0 0.0
  %104 = vmatprep.subr.mxu0 0.0
  %105 = vmatpush1.msra.mxu0 0.0
  %106 = vmatprep.subr.mxu0 0.0
  %107 = vmatpush1.msra.mxu0 0.0
  %108 = vmatprep.subr.mxu0 0.0
  %109 = vmatpush1.msra.mxu0 0.0
  %110 = vmatprep.subr.mxu0 0.0
  %111 = vmatpush1.msra.mxu0 0.0
  %112 = vmatprep.subr.mxu0 0.0
  %113 = vmatpush1.msra.mxu0 0.0
  %114 = vmatprep.subr.mxu0 0.0
  %115 = vmatpush1.msra.mxu0 0.0
  %116 = vmatprep.subr.mxu0 0.0
  %117 = vmatpush1.msra.mxu0 0.0
  %118 = vmatprep.subr.mxu0 0.0
  %119 = vmatpush1.msra.mxu0 0.0
  %120 = vmatprep.subr.mxu0 0.0
  %121 = vmatpush1.msra.mxu0 0.0
  %122 = vmatprep.subr.mxu0 0.0
  %123 = vmatpush1.msra.mxu0 0.0
  %124 = vmatprep.subr.mxu0 0.0
  %125 = vmatpush1.msra.mxu0 0.0
  %126 = vmatprep.subr.mxu0 0.0
  %127 = vmatpush1.msra.mxu0 0.0
  %128 = vmatprep.subr.mxu0 0.0
  %129 = vmatpush1.msra.mxu0 0.0
  %130 = vmatprep.subr.mxu0 0.0
  %131 = vmatpush1.msra.mxu0 0.0
  %132 = vmatprep.subr.mxu0 0.0
  %133 = vmatpush1.msra.mxu0 0.0
  %134 = vmatprep.subr.mxu0 0.0
  %135 = vmatpush1.msra.mxu0 0.0
  %136 = vmatprep.subr.mxu0 0.0
  %137 = vmatpush1.msra.mxu0 0.0
  %138 = vmatprep.subr.mxu0 0.0
  %139 = vmatpush1.msra.mxu0 0.0
  %140 = vmatprep.subr.mxu0 0.0
  %141 = vmatpush1.msra.mxu0 0.0
  %142 = vmatprep.subr.mxu0 0.0
  %143 = vmatpush1.msra.mxu0 0.0
  %144 = vmatprep.subr.mxu0 0.0
  %145 = vmatpush1.msra.mxu0 0.0
  %146 = vmatprep.subr.mxu0 0.0
  %147 = vmatpush1.msra.mxu0 0.0
  %148 = vmatprep.subr.mxu0 0.0
  %149 = vmatpush1.msra.mxu0 0.0
  %150 = vmatprep.mubr.f32.mxu0 0.0
  %151 = vmatmul.mubr.f32.gmra.mrb[0].mxu0 %v75
  %v152 = vpop.f32.mrb[0].mxu0
  %v153 = vadd.f32 %v71, %v152
  %v154 = vpop.f32.mrb[0].mxu0
  %155 = vmatprep.mubr.f32.mxu0 0.0
  %156 = vmatmul.mubr.f32.gmra.mrb[0].mxu0 %v78
  %v157 = vpop.f32.mrb[0].mxu0
  %v158 = vadd.f32 %v71, %v157
  %v159 = vpop.f32.mrb[0].mxu0
  %160 = vmatprep.mubr.f32.mxu0 0.0
  %161 = vmatmul.mubr.f32.gmra.mrb[0].mxu0 %v81
  %v162 = vpop.f32.mrb[0].mxu0
  %v163 = vadd.f32 %v71, %v162
  %v164 = vpop.f32.mrb[0].mxu0
  %165 = vmatprep.mubr.f32.mxu0 0.0
  %166 = vmatmul.mubr.f32.gmra.mrb[0].mxu0 %v84
  %v167 = vpop.f32.mrb[0].mxu0
  %v168 = vadd.f32 %v71, %v167
  %v169 = vpop.f32.mrb[0].mxu0
  %170 = vdwg.mxu0
  %vm171 = vcmp.gt.f32.partialorder %v153, 0.0
  %vm172 = vcmp.gt.f32.partialorder %v158, 0.0
  %vm173 = vcmp.gt.f32.partialorder %v163, 0.0
  %vm174 = vcmp.gt.f32.partialorder %v168, 0.0
  %v175 = vmul.f32 %v153, 0.25
  %v176 = vmul.f32 %v158, 0.25
  %v177 = vmul.f32 %v163, 0.25
  %v178 = vmul.f32 %v168, 0.25
  %v179 = vsel %vm171, %v153, %v175
  %v180 = vsel %vm172, %v158, %v176
  %v181 = vsel %vm173, %v163, %v177
  %v182 = vsel %vm174, %v168, %v178
  %v183 = vld [vmem:[%s6] sm:$0xff]
  %v184 = vld [vmem:[%s6 + $0x8] sm:$0xff]
  %v185 = vld [vmem:[%s6 + $0x10] sm:$0xff]
  %v186 = vld [vmem:[%s6 + $0x18] sm:$0xff]
  %v187 = vld [vmem:[%s6 + $0x20] sm:$0xff]
  %v188 = vld [vmem:[%s6 + $0x28] sm:$0xff]
  %v189 = vld [vmem:[%s7] sm:$0x1]
  %v191 = vlaneseq
  %v192 = vshrl.u32 %v191, 7
  %v193 = vsub.s32 0, %v192
  %v194 = vrot.slane %v189, %v193
  %vm196 = vcmask 392192
  %v198 = vsel %vm196, %v179, 0
  %v201 = vsel %vm196, %v180, 0
  %v204 = vsel %vm196, %v181, 0
  %v207 = vsel %vm196, %v182, 0
  %209 = vmatprep.subr.mxu0 0.0
  %210 = vmatpush1.msra.mxu0 %v183
  %211 = vmatprep.subr.mxu0 0.0
  %212 = vmatpush1.msra.mxu0 %v184
  %213 = vmatprep.subr.mxu0 0.0
  %214 = vmatpush1.msra.mxu0 %v185
  %215 = vmatprep.subr.mxu0 0.0
  %216 = vmatpush1.msra.mxu0 %v186
  %217 = vmatprep.subr.mxu0 0.0
  %218 = vmatpush1.msra.mxu0 %v187
  %219 = vmatprep.subr.mxu0 0.0
  %220 = vmatpush1.msra.mxu0 %v188
  %221 = vmatprep.subr.mxu0 0.0
  %222 = vmatpush1.msra.mxu0 0.0
  %223 = vmatprep.subr.mxu0 0.0
  %224 = vmatpush1.msra.mxu0 0.0
  %225 = vmatprep.subr.mxu0 0.0
  %226 = vmatpush1.msra.mxu0 0.0
  %227 = vmatprep.subr.mxu0 0.0
  %228 = vmatpush1.msra.mxu0 0.0
  %229 = vmatprep.subr.mxu0 0.0
  %230 = vmatpush1.msra.mxu0 0.0
  %231 = vmatprep.subr.mxu0 0.0
  %232 = vmatpush1.msra.mxu0 0.0
  %233 = vmatprep.subr.mxu0 0.0
  %234 = vmatpush1.msra.mxu0 0.0
  %235 = vmatprep.subr.mxu0 0.0
  %236 = vmatpush1.msra.mxu0 0.0
  %237 = vmatprep.subr.mxu0 0.0
  %238 = vmatpush1.msra.mxu0 0.0
  %239 = vmatprep.subr.mxu0 0.0
  %240 = vmatpush1.msra.mxu0 0.0
  %241 = vmatprep.subr.mxu0 0.0
  %242 = vmatpush1.msra.mxu0 0.0
  %243 = vmatprep.subr.mxu0 0.0
  %244 = vmatpush1.msra.mxu0 0.0
  %245 = vmatprep.subr.mxu0 0.0
  %246 = vmatpush1.msra.mxu0 0.0
  %247 = vmatprep.subr.mxu0 0.0
  %248 = vmatpush1.msra.mxu0 0.0
  %249 = vmatprep.subr.mxu0 0.0
  %250 = vmatpush1.msra.mxu0 0.0
  %251 = vmatprep.subr.mxu0 0.0
  %252 = vmatpush1.msra.mxu0 0.0
  %253 = vmatprep.subr.mxu0 0.0
  %254 = vmatpush1.msra.mxu0 0.0
  %255 = vmatprep.subr.mxu0 0.0
  %256 = vmatpush1.msra.mxu0 0.0
  %257 = vmatprep.subr.mxu0 0.0
  %258 = vmatpush1.msra.mxu0 0.0
  %259 = vmatprep.subr.mxu0 0.0
  %260 = vmatpush1.msra.mxu0 0.0
  %261 = vmatprep.subr.mxu0 0.0
  %262 = vmatpush1.msra.mxu0 0.0
  %263 = vmatprep.subr.mxu0 0.0
  %264 = vmatpush1.msra.mxu0 0.0
  %265 = vmatprep.subr.mxu0 0.0
  %266 = vmatpush1.msra.mxu0 0.0
  %267 = vmatprep.subr.mxu0 0.0
  %268 = vmatpush1.msra.mxu0 0.0
  %269 = vmatprep.subr.mxu0 0.0
  %270 = vmatpush1.msra.mxu0 0.0
  %271 = vmatprep.subr.mxu0 0.0
  %272 = vmatpush1.msra.mxu0 0.0
  %273 = vmatprep.mubr.f32.mxu0 0.0
  %274 = vmatmul.mubr.f32.gmra.mrb[0].mxu0 %v198
  %v275 = vpop.f32.mrb[0].mxu0
  %v276 = vadd.f32 %v194, %v275
  %v277 = vpop.f32.mrb[0].mxu0
  %278 = vmatprep.mubr.f32.mxu0 0.0
  %279 = vmatmul.mubr.f32.gmra.mrb[0].mxu0 %v201
  %v280 = vpop.f32.mrb[0].mxu0
  %v281 = vadd.f32 %v194, %v280
  %v282 = vpop.f32.mrb[0].mxu0
  %283 = vmatprep.mubr.f32.mxu0 0.0
  %284 = vmatmul.mubr.f32.gmra.mrb[0].mxu0 %v204
  %v285 = vpop.f32.mrb[0].mxu0
  %v286 = vadd.f32 %v194, %v285
  %v287 = vpop.f32.mrb[0].mxu0
  %288 = vmatprep.mubr.f32.mxu0 0.0
  %289 = vmatmul.mubr.f32.gmra.mrb[0].mxu0 %v207
  %v290 = vpop.f32.mrb[0].mxu0
  %v291 = vadd.f32 %v194, %v290
  %v292 = vpop.f32.mrb[0].mxu0
  %293 = vdwg.mxu0
  %v294 = vlaneseq
  %v295 = vshrl.u32 %v294, 7
  %v296 = vstv %s42
  %vm297 = vcmp.lt.s32.totalorder %v295, %v296
  %v298 = vsel %vm297, 1, 0
  %v299 = vcvt.s32.f32 %v298
  %v300 = vmul.f32 %v276, %v299
  %v301 = vmul.f32 %v281, %v299
  %vm302 = vcmask 523264
  %v303 = vsel %vm302, %v300, 0.0
  %v304 = vrot.slane %v303, 4
  %v305 = vadd.f32 %v303, %v304
  %v306 = vrot.slane %v305, 2
  %v307 = vadd.f32 %v305, %v306
  %v308 = vrot.slane %v307, 1
  %v309 = vadd.f32 %v307, %v308
  %v310 = vsel %vm302, %v301, 0.0
  %v311 = vrot.slane %v310, 4
  %v312 = vadd.f32 %v310, %v311
  %v313 = vrot.slane %v312, 2
  %v314 = vadd.f32 %v312, %v313
  %v315 = vrot.slane %v314, 1
  %v316 = vadd.f32 %v314, %v315
  %v317 = vsub.f32 %v309, %v300
  %v318 = vsub.f32 %v316, %v301
  %v319 = vadd.f32 %v317, %v286
  %v320 = vadd.f32 %v318, %v291
  %v321 = vld [vmem:[%s8] sm:$0xff]
  %v322 = vld [vmem:[%s8 + $0x8] sm:$0xff]
  %v323 = vld [vmem:[%s8 + $0x10] sm:$0xff]
  %v324 = vld [vmem:[%s8 + $0x18] sm:$0xff]
  %v325 = vld [vmem:[%s9] sm:$0xff]
  %v326 = vld [vmem:[%s9 + $0x8] sm:$0xff]
  %v327 = vld [vmem:[%s9 + $0x10] sm:$0xff]
  %v328 = vld [vmem:[%s9 + $0x18] sm:$0xff]
  %v329 = vld [vmem:[%s9 + $0x20] sm:$0xff]
  %v330 = vld [vmem:[%s9 + $0x28] sm:$0xff]
  %v331 = vld [vmem:[%s9 + $0x30] sm:$0xff]
  %v332 = vld [vmem:[%s9 + $0x38] sm:$0xff]
  %v333 = vld [vmem:[%s10] sm:$0x1]
  %v335 = vlaneseq
  %v336 = vshrl.u32 %v335, 7
  %v337 = vsub.s32 0, %v336
  %v338 = vrot.slane %v333, %v337
  %v341 = vsel %vm302, %v319, 0
  %v344 = vsel %vm302, %v320, 0
  %346 = vmatprep.subr.mxu0 0.0
  %347 = vmatpush1.msra.mxu0 %v325
  %348 = vmatprep.subr.mxu0 0.0
  %349 = vmatpush1.msra.mxu0 %v326
  %350 = vmatprep.subr.mxu0 0.0
  %351 = vmatpush1.msra.mxu0 %v327
  %352 = vmatprep.subr.mxu0 0.0
  %353 = vmatpush1.msra.mxu0 %v328
  %354 = vmatprep.subr.mxu0 0.0
  %355 = vmatpush1.msra.mxu0 %v329
  %356 = vmatprep.subr.mxu0 0.0
  %357 = vmatpush1.msra.mxu0 %v330
  %358 = vmatprep.subr.mxu0 0.0
  %359 = vmatpush1.msra.mxu0 %v331
  %360 = vmatprep.subr.mxu0 0.0
  %361 = vmatpush1.msra.mxu0 %v332
  %362 = vmatprep.subr.mxu0 0.0
  %363 = vmatpush1.msra.mxu0 0.0
  %364 = vmatprep.subr.mxu0 0.0
  %365 = vmatpush1.msra.mxu0 0.0
  %366 = vmatprep.subr.mxu0 0.0
  %367 = vmatpush1.msra.mxu0 0.0
  %368 = vmatprep.subr.mxu0 0.0
  %369 = vmatpush1.msra.mxu0 0.0
  %370 = vmatprep.subr.mxu0 0.0
  %371 = vmatpush1.msra.mxu0 0.0
  %372 = vmatprep.subr.mxu0 0.0
  %373 = vmatpush1.msra.mxu0 0.0
  %374 = vmatprep.subr.mxu0 0.0
  %375 = vmatpush1.msra.mxu0 0.0
  %376 = vmatprep.subr.mxu0 0.0
  %377 = vmatpush1.msra.mxu0 0.0
  %378 = vmatprep.subr.mxu0 0.0
  %379 = vmatpush1.msra.mxu0 0.0
  %380 = vmatprep.subr.mxu0 0.0
  %381 = vmatpush1.msra.mxu0 0.0
  %382 = vmatprep.subr.mxu0 0.0
  %383 = vmatpush1.msra.mxu0 0.0
  %384 = vmatprep.subr.mxu0 0.0
  %385 = vmatpush1.msra.mxu0 0.0
  %386 = vmatprep.subr.mxu0 0.0
  %387 = vmatpush1.msra.mxu0 0.0
  %388 = vmatprep.subr.mxu0 0.0
  %389 = vmatpush1.msra.mxu0 0.0
  %390 = vmatprep.subr.mxu0 0.0
  %391 = vmatpush1.msra.mxu0 0.0
  %392 = vmatprep.subr.mxu0 0.0
  %393 = vmatpush1.msra.mxu0 0.0
  %394 = vmatprep.subr.mxu0 0.0
  %395 = vmatpush1.msra.mxu0 0.0
  %396 = vmatprep.subr.mxu0 0.0
  %397 = vmatpush1.msra.mxu0 0.0
  %398 = vmatprep.subr.mxu0 0.0
  %399 = vmatpush1.msra.mxu0 0.0
  %400 = vmatprep.subr.mxu0 0.0
  %401 = vmatpush1.msra.mxu0 0.0
  %402 = vmatprep.subr.mxu0 0.0
  %403 = vmatpush1.msra.mxu0 0.0
  %404 = vmatprep.subr.mxu0 0.0
  %405 = vmatpush1.msra.mxu0 0.0
  %406 = vmatprep.subr.mxu0 0.0
  %407 = vmatpush1.msra.mxu0 0.0
  %408 = vmatprep.subr.mxu0 0.0
  %409 = vmatpush1.msra.mxu0 0.0
  %410 = vmatprep.mubr.f32.mxu0 0.0
  %411 = vmatmul.mubr.f32.gmra.mrb[0].mxu0 %v341
  %v412 = vpop.f32.mrb[0].mxu0
  %v413 = vadd.f32 %v338, %v412
  %v414 = vpop.f32.mrb[0].mxu0
  %415 = vmatprep.mubr.f32.mxu0 0.0
  %416 = vmatmul.mubr.f32.gmra.mrb[0].mxu0 %v344
  %v417 = vpop.f32.mrb[0].mxu0
  %v418 = vadd.f32 %v338, %v417
  %v419 = vpop.f32.mrb[0].mxu0
  %420 = vdwg.mxu0
  %v422 = vsel %vm73, %v47, 0
  %424 = vmatprep.subr.mxu0 0.0
  %425 = vmatpush1.msra.mxu0 %v321
  %426 = vmatprep.subr.mxu0 0.0
  %427 = vmatpush1.msra.mxu0 %v322
  %428 = vmatprep.subr.mxu0 0.0
  %429 = vmatpush1.msra.mxu0 %v323
  %430 = vmatprep.subr.mxu0 0.0
  %431 = vmatpush1.msra.mxu0 %v324
  %432 = vmatprep.subr.mxu0 0.0
  %433 = vmatpush1.msra.mxu0 0.0
  %434 = vmatprep.subr.mxu0 0.0
  %435 = vmatpush1.msra.mxu0 0.0
  %436 = vmatprep.subr.mxu0 0.0
  %437 = vmatpush1.msra.mxu0 0.0
  %438 = vmatprep.subr.mxu0 0.0
  %439 = vmatpush1.msra.mxu0 0.0
  %440 = vmatprep.subr.mxu0 0.0
  %441 = vmatpush1.msra.mxu0 0.0
  %442 = vmatprep.subr.mxu0 0.0
  %443 = vmatpush1.msra.mxu0 0.0
  %444 = vmatprep.subr.mxu0 0.0
  %445 = vmatpush1.msra.mxu0 0.0
  %446 = vmatprep.subr.mxu0 0.0
  %447 = vmatpush1.msra.mxu0 0.0
  %448 = vmatprep.subr.mxu0 0.0
  %449 = vmatpush1.msra.mxu0 0.0
  %450 = vmatprep.subr.mxu0 0.0
  %451 = vmatpush1.msra.mxu0 0.0
  %452 = vmatprep.subr.mxu0 0.0
  %453 = vmatpush1.msra.mxu0 0.0
  %454 = vmatprep.subr.mxu0 0.0
  %455 = vmatpush1.msra.mxu0 0.0
  %456 = vmatprep.subr.mxu0 0.0
  %457 = vmatpush1.msra.mxu0 0.0
  %458 = vmatprep.subr.mxu0 0.0
  %459 = vmatpush1.msra.mxu0 0.0
  %460 = vmatprep.subr.mxu0 0.0
  %461 = vmatpush1.msra.mxu0 0.0
  %462 = vmatprep.subr.mxu0 0.0
  %463 = vmatpush1.msra.mxu0 0.0
  %464 = vmatprep.subr.mxu0 0.0
  %465 = vmatpush1.msra.mxu0 0.0
  %466 = vmatprep.subr.mxu0 0.0
  %467 = vmatpush1.msra.mxu0 0.0
  %468 = vmatprep.subr.mxu0 0.0
  %469 = vmatpush1.msra.mxu0 0.0
  %470 = vmatprep.subr.mxu0 0.0
  %471 = vmatpush1.msra.mxu0 0.0
  %472 = vmatprep.subr.mxu0 0.0
  %473 = vmatpush1.msra.mxu0 0.0
  %474 = vmatprep.subr.mxu0 0.0
  %475 = vmatpush1.msra.mxu0 0.0
  %476 = vmatprep.subr.mxu0 0.0
  %477 = vmatpush1.msra.mxu0 0.0
  %478 = vmatprep.subr.mxu0 0.0
  %479 = vmatpush1.msra.mxu0 0.0
  %480 = vmatprep.subr.mxu0 0.0
  %481 = vmatpush1.msra.mxu0 0.0
  %482 = vmatprep.subr.mxu0 0.0
  %483 = vmatpush1.msra.mxu0 0.0
  %484 = vmatprep.subr.mxu0 0.0
  %485 = vmatpush1.msra.mxu0 0.0
  %486 = vmatprep.subr.mxu0 0.0
  %487 = vmatpush1.msra.mxu0 0.0
  %488 = vmatprep.mubr.f32.mxu0 0.0
  %489 = vmatmul.mubr.f32.gmra.mrb[0].mxu0 %v422
  %v490 = vpop.f32.mrb[0].mxu0
  %v491 = vadd.f32 0.0, %v490
  %v492 = vpop.f32.mrb[0].mxu0
  %493 = vdwg.mxu0
  %v496 = vunpack.c.l.s4 1966171168
  %v497 = vunpack.c.0.s8 %v496
  %v498 = vlaneseq
  %v499 = vshrl.u32 %v498, 7
  %v500 = vsub.s32 %v497, %v499
  %v501 = vrot.slane %v491, %v500
  %v502 = vcombine.high %v501, %v501
  %v504 = vunpack.c.l.s4 1966171168
  %v505 = vunpack.c.0.s8 %v504
  %v506 = vlaneseq
  %v507 = vshrl.u32 %v506, 7
  %v508 = vsub.s32 %v505, %v507
  %v509 = vrot.slane %v501, %v508
  %v511 = vunpack.c.l.s4 1966171168
  %v512 = vunpack.c.0.s8 %v511
  %v513 = vlaneseq
  %v514 = vshrl.u32 %v513, 7
  %v515 = vsub.s32 %v512, %v514
  %v516 = vrot.slane %v502, %v515
  %v517 = vlaneseq
  %v518 = vshrl.u32 %v517, 7
  %v519 = vsub.s32 0, %v518
  %v520 = vrot.slane %v509, %v519
  %v521 = vlaneseq
  %v522 = vshrl.u32 %v521, 7
  %v523 = vsub.s32 0, %v522
  %v524 = vrot.slane %v516, %v523
  %v527 = vadd.f32 %v413, %v520
  %v528 = vadd.f32 %v418, %v524
  %vm529 = vcmp.gt.f32.partialorder %v527, 0.0
  %vm530 = vcmp.gt.f32.partialorder %v528, 0.0
  %v531 = vmul.f32 %v527, 0.25
  %v532 = vmul.f32 %v528, 0.25
  %v533 = vsel %vm529, %v527, %v531
  %v534 = vsel %vm530, %v528, %v532
  %v535 = vld [vmem:[%s11] sm:$0x1]
  %v537 = vlaneseq
  %v538 = vshrl.u32 %v537, 7
  %v539 = vsub.s32 0, %v538
  %v540 = vrot.slane %v535, %v539
  %v542 = vmul.f32 %v533, %v540
  %v543 = vmul.f32 %v534, %v540
  %vm544 = vcmask 130048
  %v545 = vsel %vm544, %v542, 0.0
  %546 = vadd.xlane.f32.xlu0 %v545
  %v547 = vpop.xlane.xlu0 %546
  %v548 = vsel %vm544, %v543, 0.0
  %549 = vadd.xlane.f32.xlu0 %v548
  %v550 = vpop.xlane.xlu0 %549
  %v553 = vlaneseq
  %v554 = vand.u32 %v553, 127
  %v555 = vlaneseq
  %v556 = vshrl.u32 %v555, 7
  %v557 = vsub.s32 %v554, %v556
  %v558 = vrot.slane %v547, %v557
  %v559 = vlaneseq
  %v560 = vshrl.u32 %v559, 7
  %v561 = vsub.s32 %v554, %v560
  %v562 = vrot.slane %v550, %v561
  %vm563 = vcmask 1041409
  %v564 = vsel %vm563, %v562, %v558
  %vm566 = vcmask 58368
  %567 = vst.msk [vmem:[%s12] sm:$0x3] %vm566, %v564
  // Predicated region
  $region50: #{closed_call.23} parent=0 // pred_check
    _
  $region51: #{closed_call.23} parent=0 // pred_check_branch
    %569 = sbr.rel (0) target = $region53
  $region52: #{closed_call.23} parent=0 // pred_region
    _
  $region53: #{closed_call.23} parent=0 // pred_fallthru
    _
  // Predicated region
  $region54: #{closed_call.23} parent=0 // pred_check
    _
  $region55: #{closed_call.23} parent=0 // pred_check_branch
    %571 = sbr.rel (0) target = $region57
  $region56: #{closed_call.23} parent=0 // pred_region
    _
  $region57: #{closed_call.23} parent=0 // pred_fallthru
    _

</llo_original>
